<compile_context>
chip_gen: v5e
topology: v5e:2x2
jax: 0.10.0
libtpu: 0.0.40
codegen_flags: <defaults>
</compile_context>

<pallas_src>
import functools
import math
import numpy as np
import jax
import jax.numpy as jnp
from jax.experimental import pallas as pl
from jax.experimental.pallas import tpu as pltpu


def _round_up(x, m):
    return ((x + m - 1) // m) * m


def _pick_block(n, candidates):
    for c in candidates:
        if n % c == 0:
            return c
    return n


# ----------------------------- Pallas kernels ------------------------------

def _gate_matmul_kernel(x_ref, w_ref, b_ref, enc_ref, dec_ref):
    """(rows, E) @ (E, 2*3Hp) + b; column-split into encoder/decoder gates."""
    res = jnp.dot(x_ref[...], w_ref[...],
                  preferred_element_type=jnp.float32) + b_ref[...]
    G = enc_ref.shape[-1]
    enc_ref[...] = res[:, :G].astype(enc_ref.dtype)     # lane-aligned split
    dec_ref[...] = res[:, G:].astype(dec_ref.dtype)


def gate_matmul(x, w_cat_t, b_cat, *, block_rows):
    N, E = x.shape
    G2 = w_cat_t.shape[1]
    G = G2 // 2
    grid_spec = pltpu.PrefetchScalarGridSpec(
        num_scalar_prefetch=0,
        grid=(N // block_rows,),
        in_specs=[
            pl.BlockSpec((block_rows, E), lambda i: (i, 0)),
            pl.BlockSpec((E, G2), lambda i: (0, 0)),
            pl.BlockSpec((1, G2), lambda i: (0, 0)),
        ],
        out_specs=(
            pl.BlockSpec((block_rows, G), lambda i: (i, 0)),
            pl.BlockSpec((block_rows, G), lambda i: (i, 0)),
        ),
    )
    return pl.pallas_call(
        _gate_matmul_kernel,
        grid_spec=grid_spec,
        out_shape=(jax.ShapeDtypeStruct((N, G), jnp.bfloat16),
                   jax.ShapeDtypeStruct((N, G), jnp.bfloat16)),
        compiler_params=pltpu.CompilerParams(dimension_semantics=("parallel",)),
    )(x, w_cat_t, b_cat)


def _gru_chunk_kernel(gx_ref, len_ref, whh_ref, bhh_ref, h0_ref, *refs,
                      write_out):
    """TT GRU steps per grid iteration (PyTorch gate order r, z, n).

    gx_ref already holds x @ W_ih + b_ih (bf16); per-step work is only the
    small (B, H) x (H, 3H) recurrent matmul.  Grid = (batch_blocks, t_chunks).
    """
    if write_out:
        out_ref, hlast_ref, h_scr = refs
    else:
        hlast_ref, h_scr = refs

    c = pl.program_id(1)                       # time-chunk axis (inner)

    @pl.when(c == 0)
    def _():
        h_scr[...] = h0_ref[...]

    TT = gx_ref.shape[0]
    H = h_scr.shape[-1]
    lens = len_ref[...]                        # (B_blk, 1) int32 lengths

    for tt in range(TT):                       # static unroll -> static idx
        t = c * TT + tt                        # global time step
        h = h_scr[...]                         # (B_blk, H) f32 carried state
        gx = gx_ref[tt].astype(jnp.float32)    # bf16 -> f32 precomputed gates
        gh = jnp.dot(h.astype(jnp.bfloat16), whh_ref[...],
                     preferred_element_type=jnp.float32) + bhh_ref[...]
        r = jax.nn.sigmoid(gx[:, 0 * H:1 * H] + gh[:, 0 * H:1 * H])
        zg = jax.nn.sigmoid(gx[:, 1 * H:2 * H] + gh[:, 1 * H:2 * H])
        n = jnp.tanh(gx[:, 2 * H:3 * H] + r * gh[:, 2 * H:3 * H])
        h_new = (1.0 - zg) * n + zg * h
        m = (t < lens).astype(jnp.float32)     # packed-sequence validity
        h_scr[...] = h + m * (h_new - h)       # freeze hidden past length
        if write_out:
            out_ref[tt] = (m * h_new).astype(out_ref.dtype)  # pad with zeros

    @pl.when(c == pl.num_programs(1) - 1)
    def _():
        hlast_ref[...] = h_scr[...]


def gru_forward(gx, lens, w_hh_t, b_hh, h0, *, tt, write_out, batch_blocks=1):
    """gx: (T_pad, B_pad, 3Hp) bf16 precomputed gates (sorted batch order)."""
    T_pad, B_pad, G = gx.shape
    H_pad = h0.shape[-1]
    B_blk = B_pad // batch_blocks
    n_chunks = T_pad // tt

    if write_out:
        out_specs = (pl.BlockSpec((tt, B_blk, H_pad), lambda b, c: (c, b, 0)),
                     pl.BlockSpec((B_blk, H_pad), lambda b, c: (b, 0)))
        out_shape = (jax.ShapeDtypeStruct((T_pad, B_pad, H_pad), jnp.bfloat16),
                     jax.ShapeDtypeStruct((B_pad, H_pad), jnp.float32))
    else:
        out_specs = pl.BlockSpec((B_blk, H_pad), lambda b, c: (b, 0))
        out_shape = jax.ShapeDtypeStruct((B_pad, H_pad), jnp.float32)

    grid_spec = pltpu.PrefetchScalarGridSpec(
        num_scalar_prefetch=0,
        grid=(batch_blocks, n_chunks),
        in_specs=[
            pl.BlockSpec((tt, B_blk, G), lambda b, c: (c, b, 0)),
            pl.BlockSpec((B_blk, 1), lambda b, c: (b, 0)),      # lengths
            pl.BlockSpec((H_pad, G), lambda b, c: (0, 0)),      # W_hh^T
            pl.BlockSpec((1, G), lambda b, c: (0, 0)),          # b_hh
            pl.BlockSpec((B_blk, H_pad), lambda b, c: (b, 0)),  # h0
        ],
        out_specs=out_specs,
        scratch_shapes=[pltpu.VMEM((B_blk, H_pad), jnp.float32)],
    )
    res = pl.pallas_call(
        functools.partial(_gru_chunk_kernel, write_out=write_out),
        grid_spec=grid_spec,
        out_shape=out_shape,
        compiler_params=pltpu.CompilerParams(
            dimension_semantics=("parallel", "arbitrary")),
    )(gx, lens, w_hh_t, b_hh, h0)
    if write_out:
        return res[0], res[1]
    return None, res


def _proj_logsoftmax_kernel(sidx_ref, x_ref, w_ref, b_ref, o_ref, *, valid_cols):
    del sidx_ref  # used only by the output index_map (batch unsort)
    logits = jnp.dot(x_ref[0], w_ref[...],
                     preferred_element_type=jnp.float32) + b_ref[...]
    col = jax.lax.broadcasted_iota(jnp.int32, logits.shape, 1)
    logits = jnp.where(col < valid_cols, logits, -1e30)   # fp32 vocab-pad mask
    mx = jnp.max(logits, axis=-1, keepdims=True)
    s = logits - mx
    lse = jnp.log(jnp.sum(jnp.exp(s), axis=-1, keepdims=True))
    o_ref[0] = s - lse


def proj_logsoftmax(dec_out_bth, sorted_idx, w_t, b, *, valid_batch,
                    valid_cols, row_block):
    """dec_out_bth: (B_pad, S_pad, H_pad) bf16 in SORTED batch order.

    Output (valid_batch, S_pad, V_pad) in ORIGINAL batch order: the unsort is
    folded into the output index_map via the scalar-prefetched sorted_idx.
    """
    B_pad, S_pad, H_pad = dec_out_bth.shape
    V_pad = w_t.shape[1]
    n_s = S_pad // row_block

    est = (2 * H_pad * V_pad * 2 + 2 * V_pad * 4
           + 2 * row_block * H_pad * 2 + 2 * row_block * V_pad * 4)
    vmem_limit = int(min(max(2 * est, 32 * 1024 * 1024), 100 * 1024 * 1024))

    grid_spec = pltpu.PrefetchScalarGridSpec(
        num_scalar_prefetch=1,
        grid=(valid_batch, n_s),
        in_specs=[
            pl.BlockSpec((1, row_block, H_pad), lambda b, s, sidx: (b, s, 0)),
            pl.BlockSpec((H_pad, V_pad), lambda b, s, sidx: (0, 0)),
            pl.BlockSpec((1, V_pad), lambda b, s, sidx: (0, 0)),
        ],
        out_specs=pl.BlockSpec((1, row_block, V_pad),
                               lambda b, s, sidx: (sidx[b], s, 0)),
    )
    return pl.pallas_call(
        functools.partial(_proj_logsoftmax_kernel, valid_cols=valid_cols),
        grid_spec=grid_spec,
        out_shape=jax.ShapeDtypeStruct((valid_batch, S_pad, V_pad), jnp.float32),
        compiler_params=pltpu.CompilerParams(
            dimension_semantics=("arbitrary", "arbitrary"),
            vmem_limit_bytes=vmem_limit),
    )(sorted_idx, dec_out_bth, w_t, b)


# ----------------------------- parameters -----------------------------------

def init_params(key, vocab_size, embedding_dim, hidden_dim, latent_size):
    V, E, H, Z = vocab_size, embedding_dim, hidden_dim, latent_size
    ks = jax.random.split(key, 17)
    u = lambda k, shape, bound: jax.random.uniform(k, shape, jnp.float32, -bound, bound)
    kh = 1.0 / math.sqrt(H)
    kz = 1.0 / math.sqrt(Z)
    return dict(
        embedding=jax.random.normal(ks[0], (V, E), jnp.float32),
        enc=dict(w_ih=u(ks[1], (3 * H, E), kh), w_hh=u(ks[2], (3 * H, H), kh),
                 b_ih=u(ks[3], (3 * H,), kh), b_hh=u(ks[4], (3 * H,), kh)),
        dec=dict(w_ih=u(ks[5], (3 * H, E), kh), w_hh=u(ks[6], (3 * H, H), kh),
                 b_ih=u(ks[7], (3 * H,), kh), b_hh=u(ks[8], (3 * H,), kh)),
        hidden2mean=dict(w=u(ks[9], (Z, H), kh), b=u(ks[10], (Z,), kh)),
        hidden2logv=dict(w=u(ks[11], (Z, H), kh), b=u(ks[12], (Z,), kh)),
        # z2hidden exists in __init__ but is unused by forward(); kept for parity.
        z2hidden=dict(w=u(ks[13], (H, Z), kz), b=u(ks[14], (H,), kz)),
        outputs2vocab=dict(w=u(ks[15], (V, H), kh), b=u(ks[16], (V,), kh)),
    )


# -------------------------- weight / layout prep -----------------------------

def _pad_gate_cols(wt, H, H_pad):
    """wt: (K, 3H) -> (K, 3*H_pad), each gate block placed at g*H_pad."""
    K = wt.shape[0]
    out = jnp.zeros((K, 3 * H_pad), wt.dtype)
    for g in range(3):
        out = out.at[:, g * H_pad:g * H_pad + H].set(wt[:, g * H:(g + 1) * H])
    return out


def _pad_gate_bias(b, H, H_pad):
    out = jnp.zeros((3 * H_pad,), b.dtype)
    for g in range(3):
        out = out.at[g * H_pad:g * H_pad + H].set(b[g * H:(g + 1) * H])
    return out


def _prep_rnn_weights(rnn_params, H, H_pad):
    w_ih_t = _pad_gate_cols(jnp.asarray(rnn_params["w_ih"]).T, H, H_pad)   # (E, 3Hp)
    b_ih = _pad_gate_bias(jnp.asarray(rnn_params["b_ih"]), H, H_pad)       # (3Hp,)
    w_hh_t = _pad_gate_cols(jnp.asarray(rnn_params["w_hh"]).T, H, H_pad)   # (H, 3Hp)
    w_hh_t = jnp.zeros((H_pad, 3 * H_pad), jnp.float32).at[:H].set(w_hh_t)
    w_hh_t = w_hh_t.astype(jnp.bfloat16)                                   # MXU operand
    b_hh = _pad_gate_bias(jnp.asarray(rnn_params["b_hh"]), H, H_pad)[None, :]
    return w_ih_t, b_ih, w_hh_t, b_hh


# ------------------------------ forward pass ---------------------------------

def svae_forward(params, input_sequence, lengths_np, eps):
    """Pallas equivalent of SVAE.forward(input_sequence, length, pretrain=False)."""
    V, E = params["embedding"].shape
    H = params["enc"]["w_hh"].shape[1]
    B = input_sequence.shape[0]

    # Host-side sort by length (trace-time constant, like torch.sort on CPU).
    sorted_idx = np.argsort(-lengths_np, kind="stable")
    sorted_lengths = lengths_np[sorted_idx]
    S = int(sorted_lengths[0])                    # pad_packed max length

    H_pad = _round_up(H, 128)
    V_pad = _round_up(V, 128)
    B_pad = _round_up(B, 16)                      # 16: bf16 sublane-tile aligned
    TT = 16 if S <= 16 else 32                    # GRU steps per grid iteration
    T_pad = _round_up(S, TT)
    G = 3 * H_pad
    # v7x: split the (independent) batch rows across the two TensorCores.
    NB = 2 if B_pad >= 32 else 1

    # ---- embedding lookup + time-major padded layout (XLA glue) -------------
    seq_sorted = jnp.asarray(input_sequence)[jnp.asarray(sorted_idx)][:, :S]
    emb = jnp.take(params["embedding"], seq_sorted, axis=0)         # (B, S, E)
    x_tbe = jnp.transpose(emb, (1, 0, 2)).astype(jnp.float32)       # (S, B, E)
    x_tbe = jnp.zeros((T_pad, B_pad, E), jnp.float32).at[:S, :B].set(x_tbe)
    x_bf16 = x_tbe.astype(jnp.bfloat16)

    # ---- hoisted x @ W_ih for encoder AND decoder (one MXU pass, 2 outputs) --
    enc_w_ih_t, enc_b_ih, enc_w_hh_t, enc_b_hh = _prep_rnn_weights(params["enc"], H, H_pad)
    dec_w_ih_t, dec_b_ih, dec_w_hh_t, dec_b_hh = _prep_rnn_weights(params["dec"], H, H_pad)
    w_ih_cat = jnp.concatenate([enc_w_ih_t, dec_w_ih_t], axis=1).astype(jnp.bfloat16)
    b_ih_cat = jnp.concatenate([enc_b_ih, dec_b_ih])[None, :]       # (1, 2G)

    rows = T_pad * B_pad
    block_rows = _pick_block(rows, (512, 256, 128, 64, 32, 16, 8))
    gx_enc, gx_dec = gate_matmul(x_bf16.reshape(rows, E), w_ih_cat, b_ih_cat,
                                 block_rows=block_rows)             # bf16 each
    gx_enc = gx_enc.reshape(T_pad, B_pad, G)
    gx_dec = gx_dec.reshape(T_pad, B_pad, G)

    # lengths (sorted order) for in-kernel packed-sequence masking
    lens = jnp.zeros((B_pad, 1), jnp.int32).at[:B, 0].set(
        jnp.asarray(sorted_lengths, dtype=jnp.int32))

    # ---- encoder GRU (no per-step output writeback) --------------------------
    h0 = jnp.zeros((B_pad, H_pad), jnp.float32)
    _, h_enc = gru_forward(gx_enc, lens, enc_w_hh_t, enc_b_hh, h0,
                           tt=TT, write_out=False, batch_blocks=NB)

    # ---- reparameterisation head (tiny -> plain XLA) -------------------------
    h = h_enc[:B, :H]
    mean = h @ params["hidden2mean"]["w"].T + params["hidden2mean"]["b"]
    logv = h @ params["hidden2logv"]["w"].T + params["hidden2logv"]["b"]
    z = eps * jnp.exp(0.5 * logv) + mean
    mean, logv, z = mean[None], logv[None], z[None]                 # (1, B, Z)

    # ---- decoder GRU (bf16 per-step outputs) ---------------------------------
    dec_out_tbh, _ = gru_forward(gx_dec, lens, dec_w_hh_t, dec_b_hh, h_enc,
                                 tt=TT, write_out=True, batch_blocks=NB)

    # one small bf16 transpose to batch-major (still sorted order); the unsort
    # to original batch order is folded into the projection's output index_map.
    dec_out_bth = jnp.transpose(dec_out_tbh, (1, 0, 2))   # (B_pad, T_pad, H_pad)

    # ---- vocab projection + log_softmax --------------------------------------
    w_out_t = jnp.zeros((H_pad, V_pad), jnp.float32).at[:H, :V].set(
        jnp.asarray(params["outputs2vocab"]["w"]).T).astype(jnp.bfloat16)
    b_out = jnp.zeros((1, V_pad), jnp.float32).at[0, :V].set(params["outputs2vocab"]["b"])

    row_block = _pick_block(T_pad, (256, 128, 64, 32, 16))
    sorted_idx_arr = jnp.asarray(sorted_idx, dtype=jnp.int32)
    logp_full = proj_logsoftmax(dec_out_bth, sorted_idx_arr, w_out_t, b_out,
                                valid_batch=B, valid_cols=V, row_block=row_block)
    logp = logp_full[:, :S, :V]                                     # (B, S, V)
    return logp, mean, logv, z


# ------------------------- pure-JAX reference (check) ------------------------

def _bf(a):
    # mirrors the kernels' bf16 operands / bf16-stored intermediates
    return a.astype(jnp.bfloat16).astype(jnp.float32)


def svae_forward_ref(params, input_sequence, lengths_np, eps):
    V, E = params["embedding"].shape
    H = params["enc"]["w_hh"].shape[1]
    B = input_sequence.shape[0]
    sorted_idx = np.argsort(-lengths_np, kind="stable")
    sorted_lengths = lengths_np[sorted_idx]
    reversed_idx = np.argsort(sorted_idx, kind="stable")
    S = int(sorted_lengths[0])

    seq_sorted = jnp.asarray(input_sequence)[jnp.asarray(sorted_idx)][:, :S]
    emb = jnp.take(params["embedding"], seq_sorted, axis=0)          # (B, S, E)
    x_tbe = jnp.transpose(emb, (1, 0, 2)).astype(jnp.float32)        # (S, B, E)
    mask = jnp.asarray((np.arange(S)[:, None] < sorted_lengths[None, :])
                       .astype(np.float32))[:, :, None]              # (S, B, 1)

    def run_gru(w_ih, w_hh, b_ih, b_hh, h0):
        w_ih_t = jnp.asarray(w_ih).T
        w_hh_t = _bf(jnp.asarray(w_hh).T)
        # gx stored in bf16 in the kernel path -> mirror the rounding here
        gx_all = _bf(jnp.einsum("sbe,eg->sbg", _bf(x_tbe), _bf(w_ih_t)) + b_ih)

        def step(hc, inp):
            gx, m = inp
            gh = _bf(hc) @ w_hh_t + b_hh
            r = jax.nn.sigmoid(gx[:, :H] + gh[:, :H])
            zg = jax.nn.sigmoid(gx[:, H:2 * H] + gh[:, H:2 * H])
            n = jnp.tanh(gx[:, 2 * H:] + r * gh[:, 2 * H:])
            h_new = (1.0 - zg) * n + zg * hc
            h_next = m * h_new + (1.0 - m) * hc
            return h_next, m * h_new

        h_last, outs = jax.lax.scan(step, h0, (gx_all, mask))
        return outs, h_last

    enc, dec = params["enc"], params["dec"]
    _, h_enc = run_gru(enc["w_ih"], enc["w_hh"], enc["b_ih"], enc["b_hh"],
                       jnp.zeros((B, H), jnp.float32))
    mean = h_enc @ params["hidden2mean"]["w"].T + params["hidden2mean"]["b"]
    logv = h_enc @ params["hidden2logv"]["w"].T + params["hidden2logv"]["b"]
    z = eps * jnp.exp(0.5 * logv) + mean
    mean, logv, z = mean[None], logv[None], z[None]

    dec_out, _ = run_gru(dec["w_ih"], dec["w_hh"], dec["b_ih"], dec["b_hh"], h_enc)
    dec_out = jnp.transpose(dec_out, (1, 0, 2))[jnp.asarray(reversed_idx)]   # (B, S, H)
    logits = _bf(dec_out.reshape(B * S, H)) @ _bf(params["outputs2vocab"]["w"].T) \
        + params["outputs2vocab"]["b"]
    logp = jax.nn.log_softmax(logits, axis=-1).reshape(B, S, V)
    return logp, mean, logv, z


# ----------------------------------- main ------------------------------------

if __name__ == "__main__":
    VOCAB, EMB, HID, LAT = 32, 16, 32, 16
    B, T = 4, 8
    PAD_IDX = 0

    key = jax.random.PRNGKey(0)
    kp, kseq, keps = jax.random.split(key, 3)
    params = init_params(kp, VOCAB, EMB, HID, LAT)

    lengths_np = np.array([5, 8, 3, 6], dtype=np.int32)
    tokens = jax.random.randint(kseq, (B, T), 4, VOCAB, dtype=jnp.int32)
    valid = jnp.asarray(np.arange(T)[None, :] < lengths_np[:, None])
    input_sequence = jnp.where(valid, tokens, PAD_IDX)            # (B, T) padded
    eps = jax.random.normal(keps, (B, LAT), jnp.float32)          # torch.randn([B, z])

    logp, mean, logv, z = svae_forward(params, input_sequence, lengths_np, eps)
    jax.block_until_ready((logp, mean, logv, z))

    # sanity check against a pure-JAX reference with the same numerics recipe
    logp_r, mean_r, logv_r, z_r = svae_forward_ref(params, input_sequence,
                                                   lengths_np, eps)
    assert logp.shape == (B, int(lengths_np.max()), VOCAB)
    assert mean.shape == logv.shape == z.shape == (1, B, LAT)
    for got, ref in ((logp, logp_r), (mean, mean_r), (logv, logv_r), (z, z_r)):
        np.testing.assert_allclose(np.asarray(got), np.asarray(ref),
                                   rtol=2e-2, atol=2e-2)
    assert np.all(np.isfinite(np.asarray(logp)))
    print("KERNEL_OK")
</pallas_src>

<mosaic_0001>
module attributes {stable_mosaic.version = 11 : i64} {
  func.func @_gate_matmul_kernel(%arg0: i32, %arg1: memref<256x16xbf16, #tpu.memory_space<vmem>>, %arg2: memref<16x768xbf16, #tpu.memory_space<vmem>>, %arg3: memref<1x768xf32, #tpu.memory_space<vmem>>, %arg4: memref<256x384xbf16, #tpu.memory_space<vmem>>, %arg5: memref<256x384xbf16, #tpu.memory_space<vmem>>) attributes {dimension_semantics = [#tpu.dimension_semantics<parallel>], iteration_bounds = array<i64: 1>, scalar_prefetch = 0 : i64, scratch_operands = 0 : i64, tpu.core_type = #tpu.core_type<tc>, window_params = [{transform_indices = @transform_0, window_bounds = array<i64: 256, 16>}, {pipeline_mode = #tpu.pipeline_mode<synchronous>, transform_indices = @transform_1, window_bounds = array<i64: 16, 768>}, {pipeline_mode = #tpu.pipeline_mode<synchronous>, transform_indices = @transform_2, window_bounds = array<i64: 1, 768>}, {transform_indices = @transform_3, window_bounds = array<i64: 256, 384>}, {transform_indices = @transform_4, window_bounds = array<i64: 256, 384>}]} {
    %c0 = arith.constant 0 : index
    %c0_0 = arith.constant 0 : index
    %0 = vector.load %arg1[%c0, %c0_0] : memref<256x16xbf16, #tpu.memory_space<vmem>>, vector<256x16xbf16>
    %c0_1 = arith.constant 0 : index
    %c0_2 = arith.constant 0 : index
    %1 = vector.load %arg2[%c0_1, %c0_2] : memref<16x768xbf16, #tpu.memory_space<vmem>>, vector<16x768xbf16>
    %cst = arith.constant dense<0.000000e+00> : vector<256x768xf32>
    %2 = tpu.matmul %0, %1, %cst {dimension_numbers = #tpu.dot_dimension_numbers<[1], [0], [0], [1], [0, 0, 1, 1], [], []>} : vector<256x16xbf16>, vector<16x768xbf16>, vector<256x768xf32> -> vector<256x768xf32>
    %c0_3 = arith.constant 0 : index
    %c0_4 = arith.constant 0 : index
    %3 = vector.load %arg3[%c0_3, %c0_4] : memref<1x768xf32, #tpu.memory_space<vmem>>, vector<1x768xf32>
    %4 = vector.broadcast %3 : vector<1x768xf32> to vector<256x768xf32>
    %5 = arith.addf %2, %4 : vector<256x768xf32>
    %6 = vector.extract_strided_slice %5 {offsets = [0, 0], sizes = [256, 384], strides = [1, 1]} : vector<256x768xf32> to vector<256x384xf32>
    %7 = arith.truncf %6 : vector<256x384xf32> to vector<256x384xbf16>
    %c0_5 = arith.constant 0 : index
    %c0_6 = arith.constant 0 : index
    %8 = vector.load %arg4[%c0_5, %c0_6] : memref<256x384xbf16, #tpu.memory_space<vmem>>, vector<256x384xbf16>
    tpu.vector_store %arg4[%c0_5, %c0_6], %7 {strides = array<i32>} : memref<256x384xbf16, #tpu.memory_space<vmem>>, vector<256x384xbf16>,
    %9 = vector.extract_strided_slice %5 {offsets = [0, 384], sizes = [256, 384], strides = [1, 1]} : vector<256x768xf32> to vector<256x384xf32>
    %10 = arith.truncf %9 : vector<256x384xf32> to vector<256x384xbf16>
    %c0_7 = arith.constant 0 : index
    %c0_8 = arith.constant 0 : index
    %11 = vector.load %arg5[%c0_7, %c0_8] : memref<256x384xbf16, #tpu.memory_space<vmem>>, vector<256x384xbf16>
    tpu.vector_store %arg5[%c0_7, %c0_8], %10 {strides = array<i32>} : memref<256x384xbf16, #tpu.memory_space<vmem>>, vector<256x384xbf16>,
    return
  }
  func.func @transform_0(%arg0: i32) -> (i32, i32) {
    %c0_i32 = arith.constant 0 : i32
    %c0_i32_0 = arith.constant 0 : i32
    return %arg0, %c0_i32 : i32, i32
  }
  func.func @transform_1(%arg0: i32) -> (i32, i32) {
    %c0_i32 = arith.constant 0 : i32
    %c0_i32_0 = arith.constant 0 : i32
    %c0_i32_1 = arith.constant 0 : i32
    return %c0_i32, %c0_i32_0 : i32, i32
  }
  func.func @transform_2(%arg0: i32) -> (i32, i32) {
    %c0_i32 = arith.constant 0 : i32
    %c0_i32_0 = arith.constant 0 : i32
    %c0_i32_1 = arith.constant 0 : i32
    return %c0_i32, %c0_i32_0 : i32, i32
  }
  func.func @transform_3(%arg0: i32) -> (i32, i32) {
    %c0_i32 = arith.constant 0 : i32
    %c0_i32_0 = arith.constant 0 : i32
    return %arg0, %c0_i32 : i32, i32
  }
  func.func @transform_4(%arg0: i32) -> (i32, i32) {
    %c0_i32 = arith.constant 0 : i32
    %c0_i32_0 = arith.constant 0 : i32
    return %arg0, %c0_i32 : i32, i32
  }
}

</mosaic_0001>

<llo_original>
// kernel: tpu_custom_call.1
$region0: #{tpu_custom_call.1}
  #allocation0 [shape = 'u32[]', space=smem, size = 0x4, offset = 0x4, fixed_abs, tag = 'smem constant byte address 0x4 - core index']
  #allocation1 [shape = 'u32[72,128]{1,0:T(1,128)}', space=vmem, size = 0x9000, scoped, tag = 'internal scratch']
  %s0 = inlined_call_operand.vmem [shape: bf16[256,16], index: 0, kind: input, shape index: {}]
  %s1 = inlined_call_operand.vmem [shape: bf16[16,768], index: 1, kind: input, shape index: {}]
  %s2 = inlined_call_operand.vmem [shape: f32[1,768], index: 2, kind: input, shape index: {}]
  %s3 = inlined_call_operand.hbm [shape: bf16[256,384], index: 3, kind: output, shape index: {0}]
  %s4 = inlined_call_operand.hbm [shape: bf16[256,384], index: 4, kind: output, shape index: {1}]
  %5 = xla_tuple %s3, %s4
  %s6 = sld [smem:[#allocation0]]
  $region30: #{tpu_custom_call.1} parent=0
    _
  %s8 = ssub.s32 1, %s6
  %s9 = scalar_select 0, %s8, %s6
  $region1: #{tpu_custom_call.1} parent=0
    #allocation2 [shape = 'u8[196608]{0}', space=vmem, size = 0x30000, scoped, tag = 'output window, operand 0, single buffered']
    #allocation3 [shape = 's32[1]{0}', space=sflag, size = 0x4, scoped, tag = 'scoped memory for tpu_custom_call.1']
    #allocation4 [shape = 'u8[196608]{0}', space=vmem, size = 0x30000, scoped, tag = 'output window, operand 1, single buffered']
    #allocation5 [shape = 's32[1]{0}', space=sflag, size = 0x4, scoped, tag = 'scoped memory for tpu_custom_call.1']
    %10 = vsyncpa [#allocation3], 0
    %11 = vsyncpa [#allocation5], 0
    // Predicated region
    $region2: #{tpu_custom_call.1} parent=1 // pred_check
      _
    $region3: #{tpu_custom_call.1} parent=1 // pred_check_branch
      %13 = sbr.rel (0) target = $region5
    $region4: #{tpu_custom_call.1} parent=1 // pred_region
      _
    $region5: #{tpu_custom_call.1} parent=1 // pred_fallthru
      _
    // Predicated region
    $region6: #{tpu_custom_call.1} parent=1 // pred_check
      _
    $region7: #{tpu_custom_call.1} parent=1 // pred_check_branch
      %15 = sbr.rel (0) target = $region9
    $region8: #{tpu_custom_call.1} parent=1 // pred_region
      _
    $region9: #{tpu_custom_call.1} parent=1 // pred_fallthru
      _
    // Predicated region
    $region10: #{tpu_custom_call.1} parent=1 // pred_check
      _
    $region11: #{tpu_custom_call.1} parent=1 // pred_check_branch
      %17 = sbr.rel (0) target = $region13
    $region12: #{tpu_custom_call.1} parent=1 // pred_region
      _
    $region13: #{tpu_custom_call.1} parent=1 // pred_fallthru
      _
    %v19 = vld [vmem:[%s0] sm:$0xf]
    %v20 = vld [vmem:[%s0 + $0x4] sm:$0xf]
    %v21 = vld [vmem:[%s0 + $0x8] sm:$0xf]
    %v22 = vld [vmem:[%s0 + $0xc] sm:$0xf]
    %v23 = vld [vmem:[%s0 + $0x10] sm:$0xf]
    %v24 = vld [vmem:[%s0 + $0x14] sm:$0xf]
    %v25 = vld [vmem:[%s0 + $0x18] sm:$0xf]
    %v26 = vld [vmem:[%s0 + $0x1c] sm:$0xf]
    %v27 = vld [vmem:[%s0 + $0x20] sm:$0xf]
    %v28 = vld [vmem:[%s0 + $0x24] sm:$0xf]
    %v29 = vld [vmem:[%s0 + $0x28] sm:$0xf]
    %v30 = vld [vmem:[%s0 + $0x2c] sm:$0xf]
    %v31 = vld [vmem:[%s0 + $0x30] sm:$0xf]
    %v32 = vld [vmem:[%s0 + $0x34] sm:$0xf]
    %v33 = vld [vmem:[%s0 + $0x38] sm:$0xf]
    %v34 = vld [vmem:[%s0 + $0x3c] sm:$0xf]
    %v35 = vld [vmem:[%s0 + $0x40] sm:$0xf]
    %v36 = vld [vmem:[%s0 + $0x44] sm:$0xf]
    %v37 = vld [vmem:[%s0 + $0x48] sm:$0xf]
    %v38 = vld [vmem:[%s0 + $0x4c] sm:$0xf]
    %v39 = vld [vmem:[%s0 + $0x50] sm:$0xf]
    %v40 = vld [vmem:[%s0 + $0x54] sm:$0xf]
    %v41 = vld [vmem:[%s0 + $0x58] sm:$0xf]
    %v42 = vld [vmem:[%s0 + $0x5c] sm:$0xf]
    %v43 = vld [vmem:[%s0 + $0x60] sm:$0xf]
    %v44 = vld [vmem:[%s0 + $0x64] sm:$0xf]
    %v45 = vld [vmem:[%s0 + $0x68] sm:$0xf]
    %v46 = vld [vmem:[%s0 + $0x6c] sm:$0xf]
    %v47 = vld [vmem:[%s0 + $0x70] sm:$0xf]
    %v48 = vld [vmem:[%s0 + $0x74] sm:$0xf]
    %v49 = vld [vmem:[%s0 + $0x78] sm:$0xf]
    %v50 = vld [vmem:[%s0 + $0x7c] sm:$0xf]
    %v51 = vld [vmem:[%s1] sm:$0xff]
    %v52 = vld [vmem:[%s1 + $0x8] sm:$0xff]
    %v53 = vld [vmem:[%s1 + $0x10] sm:$0xff]
    %v54 = vld [vmem:[%s1 + $0x18] sm:$0xff]
    %v55 = vld [vmem:[%s1 + $0x20] sm:$0xff]
    %v56 = vld [vmem:[%s1 + $0x28] sm:$0xff]
    %v57 = vld [vmem:[%s2] sm:$0x3f]
    %v59 = vperm.slane %v57, 0
    %v60 = vperm.slane %v57, 1
    %v61 = vperm.slane %v57, 2
    %v62 = vperm.slane %v57, 3
    %v63 = vperm.slane %v57, 4
    %v64 = vperm.slane %v57, 5
    %v103 = vunpack.c.l.b16 %v19
    %v104 = vunpack.c.l.b16 %v20
    %v105 = vunpack.c.l.b16 %v21
    %v106 = vunpack.c.l.b16 %v22
    %v107 = vunpack.c.l.b16 %v23
    %v108 = vunpack.c.l.b16 %v24
    %v109 = vunpack.c.l.b16 %v25
    %v110 = vunpack.c.l.b16 %v26
    %v111 = vunpack.c.l.b16 %v27
    %v112 = vunpack.c.l.b16 %v28
    %v113 = vunpack.c.l.b16 %v29
    %v114 = vunpack.c.l.b16 %v30
    %v115 = vunpack.c.l.b16 %v31
    %v116 = vunpack.c.l.b16 %v32
    %v117 = vunpack.c.l.b16 %v33
    %v118 = vunpack.c.l.b16 %v34
    %v119 = vunpack.c.l.b16 %v35
    %v120 = vunpack.c.l.b16 %v36
    %v121 = vunpack.c.l.b16 %v37
    %v122 = vunpack.c.l.b16 %v38
    %v123 = vunpack.c.l.b16 %v39
    %v124 = vunpack.c.l.b16 %v40
    %v125 = vunpack.c.l.b16 %v41
    %v126 = vunpack.c.l.b16 %v42
    %v127 = vunpack.c.l.b16 %v43
    %v128 = vunpack.c.l.b16 %v44
    %v129 = vunpack.c.l.b16 %v45
    %v130 = vunpack.c.l.b16 %v46
    %v131 = vunpack.c.l.b16 %v47
    %v132 = vunpack.c.l.b16 %v48
    %v133 = vunpack.c.l.b16 %v49
    %v134 = vunpack.c.l.b16 %v50
    %v135 = vpack.c.b16 %v104, %v103
    %v136 = vpack.c.b16 %v106, %v105
    %v137 = vpack.c.b16 %v108, %v107
    %v138 = vpack.c.b16 %v110, %v109
    %v139 = vpack.c.b16 %v112, %v111
    %v140 = vpack.c.b16 %v114, %v113
    %v141 = vpack.c.b16 %v116, %v115
    %v142 = vpack.c.b16 %v118, %v117
    %v143 = vpack.c.b16 %v120, %v119
    %v144 = vpack.c.b16 %v122, %v121
    %v145 = vpack.c.b16 %v124, %v123
    %v146 = vpack.c.b16 %v126, %v125
    %v147 = vpack.c.b16 %v128, %v127
    %v148 = vpack.c.b16 %v130, %v129
    %v149 = vpack.c.b16 %v132, %v131
    %v150 = vpack.c.b16 %v134, %v133
    %v157 = vunpack.c.l.b16 %v51
    %v158 = vunpack.c.h.b16 %v51
    %v159 = vunpack.c.l.b16 %v52
    %v160 = vunpack.c.h.b16 %v52
    %v161 = vunpack.c.l.b16 %v53
    %v162 = vunpack.c.h.b16 %v53
    %v163 = vunpack.c.l.b16 %v54
    %v164 = vunpack.c.h.b16 %v54
    %v165 = vunpack.c.l.b16 %v55
    %v166 = vunpack.c.h.b16 %v55
    %v167 = vunpack.c.l.b16 %v56
    %v168 = vunpack.c.h.b16 %v56
    %v169 = vpack.c.b16 %v163, %v157
    %v170 = vpack.c.b16 %v164, %v158
    %v171 = vpack.c.b16 %v165, %v159
    %v172 = vpack.c.b16 %v166, %v160
    %v173 = vpack.c.b16 %v167, %v161
    %v174 = vpack.c.b16 %v168, %v162
    %vm181 = vcmask 130048
    %v183 = vsel %vm181, %v135, 0
    %v186 = vsel %vm181, %v136, 0
    %v189 = vsel %vm181, %v137, 0
    %v192 = vsel %vm181, %v138, 0
    %v195 = vsel %vm181, %v139, 0
    %v198 = vsel %vm181, %v140, 0
    %v201 = vsel %vm181, %v141, 0
    %v204 = vsel %vm181, %v142, 0
    %v207 = vsel %vm181, %v143, 0
    %v210 = vsel %vm181, %v144, 0
    %v213 = vsel %vm181, %v145, 0
    %v216 = vsel %vm181, %v146, 0
    %v219 = vsel %vm181, %v147, 0
    %v222 = vsel %vm181, %v148, 0
    %v225 = vsel %vm181, %v149, 0
    %v228 = vsel %vm181, %v150, 0
    %230 = vmatpush.bf16.msra.mxu0 0
    %231 = vmatpush.bf16.msra.mxu0 0
    %232 = vmatpush.bf16.msra.mxu0 0
    %233 = vmatpush.bf16.msra.mxu0 0
    %234 = vmatpush.bf16.msra.mxu0 0
    %235 = vmatpush.bf16.msra.mxu0 0
    %236 = vmatpush.bf16.msra.mxu0 0
    %237 = vmatpush.bf16.msra.mxu0 %v169
    %238 = vmatmul.bf16.gmra.mxu0 %v183
    %v239 = vpop.f32.mrf.mxu0
    %v240 = vadd.f32 %v59, %v239
    %v241 = vpop.f32.mrf.mxu0
    %v242 = vadd.f32 %v59, %v241
    %243 = vmatmul.bf16.gmra.mxu0 %v186
    %v244 = vpop.f32.mrf.mxu0
    %v245 = vadd.f32 %v59, %v244
    %v246 = vpop.f32.mrf.mxu0
    %v247 = vadd.f32 %v59, %v246
    %248 = vmatmul.bf16.gmra.mxu0 %v189
    %v249 = vpop.f32.mrf.mxu0
    %v250 = vadd.f32 %v59, %v249
    %v251 = vpop.f32.mrf.mxu0
    %v252 = vadd.f32 %v59, %v251
    %253 = vmatmul.bf16.gmra.mxu0 %v192
    %v254 = vpop.f32.mrf.mxu0
    %v255 = vadd.f32 %v59, %v254
    %v256 = vpop.f32.mrf.mxu0
    %v257 = vadd.f32 %v59, %v256
    %258 = vmatmul.bf16.gmra.mxu0 %v195
    %v259 = vpop.f32.mrf.mxu0
    %v260 = vadd.f32 %v59, %v259
    %v261 = vpop.f32.mrf.mxu0
    %v262 = vadd.f32 %v59, %v261
    %263 = vmatmul.bf16.gmra.mxu0 %v198
    %v264 = vpop.f32.mrf.mxu0
    %v265 = vadd.f32 %v59, %v264
    %v266 = vpop.f32.mrf.mxu0
    %v267 = vadd.f32 %v59, %v266
    %268 = vmatmul.bf16.gmra.mxu0 %v201
    %v269 = vpop.f32.mrf.mxu0
    %v270 = vadd.f32 %v59, %v269
    %v271 = vpop.f32.mrf.mxu0
    %v272 = vadd.f32 %v59, %v271
    %273 = vmatmul.bf16.gmra.mxu0 %v204
    %v274 = vpop.f32.mrf.mxu0
    %v275 = vadd.f32 %v59, %v274
    %v276 = vpop.f32.mrf.mxu0
    %v277 = vadd.f32 %v59, %v276
    %278 = vmatmul.bf16.gmra.mxu0 %v207
    %v279 = vpop.f32.mrf.mxu0
    %v280 = vadd.f32 %v59, %v279
    %v281 = vpop.f32.mrf.mxu0
    %v282 = vadd.f32 %v59, %v281
    %283 = vmatmul.bf16.gmra.mxu0 %v210
    %v284 = vpop.f32.mrf.mxu0
    %v285 = vadd.f32 %v59, %v284
    %v286 = vpop.f32.mrf.mxu0
    %v287 = vadd.f32 %v59, %v286
    %288 = vmatmul.bf16.gmra.mxu0 %v213
    %v289 = vpop.f32.mrf.mxu0
    %v290 = vadd.f32 %v59, %v289
    %v291 = vpop.f32.mrf.mxu0
    %v292 = vadd.f32 %v59, %v291
    %293 = vmatmul.bf16.gmra.mxu0 %v216
    %v294 = vpop.f32.mrf.mxu0
    %v295 = vadd.f32 %v59, %v294
    %v296 = vpop.f32.mrf.mxu0
    %v297 = vadd.f32 %v59, %v296
    %298 = vmatmul.bf16.gmra.mxu0 %v219
    %v299 = vpop.f32.mrf.mxu0
    %v300 = vadd.f32 %v59, %v299
    %v301 = vpop.f32.mrf.mxu0
    %v302 = vadd.f32 %v59, %v301
    %303 = vmatmul.bf16.gmra.mxu0 %v222
    %v304 = vpop.f32.mrf.mxu0
    %v305 = vadd.f32 %v59, %v304
    %v306 = vpop.f32.mrf.mxu0
    %v307 = vadd.f32 %v59, %v306
    %308 = vmatmul.bf16.gmra.mxu0 %v225
    %v309 = vpop.f32.mrf.mxu0
    %v310 = vadd.f32 %v59, %v309
    %v311 = vpop.f32.mrf.mxu0
    %v312 = vadd.f32 %v59, %v311
    %313 = vmatmul.bf16.gmra.mxu0 %v228
    %v314 = vpop.f32.mrf.mxu0
    %v315 = vadd.f32 %v59, %v314
    %v316 = vpop.f32.mrf.mxu0
    %v317 = vadd.f32 %v59, %v316
    %318 = vdwg.mxu0
    %319 = vmatpush.bf16.msra.mxu0 0
    %320 = vmatpush.bf16.msra.mxu0 0
    %321 = vmatpush.bf16.msra.mxu0 0
    %322 = vmatpush.bf16.msra.mxu0 0
    %323 = vmatpush.bf16.msra.mxu0 0
    %324 = vmatpush.bf16.msra.mxu0 0
    %325 = vmatpush.bf16.msra.mxu0 0
    %326 = vmatpush.bf16.msra.mxu0 %v170
    %327 = vmatmul.bf16.gmra.mxu0 %v183
    %v328 = vpop.f32.mrf.mxu0
    %v329 = vadd.f32 %v60, %v328
    %v330 = vpop.f32.mrf.mxu0
    %v331 = vadd.f32 %v60, %v330
    %332 = vmatmul.bf16.gmra.mxu0 %v186
    %v333 = vpop.f32.mrf.mxu0
    %v334 = vadd.f32 %v60, %v333
    %v335 = vpop.f32.mrf.mxu0
    %v336 = vadd.f32 %v60, %v335
    %337 = vmatmul.bf16.gmra.mxu0 %v189
    %v338 = vpop.f32.mrf.mxu0
    %v339 = vadd.f32 %v60, %v338
    %v340 = vpop.f32.mrf.mxu0
    %v341 = vadd.f32 %v60, %v340
    %342 = vmatmul.bf16.gmra.mxu0 %v192
    %v343 = vpop.f32.mrf.mxu0
    %v344 = vadd.f32 %v60, %v343
    %v345 = vpop.f32.mrf.mxu0
    %v346 = vadd.f32 %v60, %v345
    %347 = vmatmul.bf16.gmra.mxu0 %v195
    %v348 = vpop.f32.mrf.mxu0
    %v349 = vadd.f32 %v60, %v348
    %v350 = vpop.f32.mrf.mxu0
    %v351 = vadd.f32 %v60, %v350
    %352 = vmatmul.bf16.gmra.mxu0 %v198
    %v353 = vpop.f32.mrf.mxu0
    %v354 = vadd.f32 %v60, %v353
    %v355 = vpop.f32.mrf.mxu0
    %v356 = vadd.f32 %v60, %v355
    %357 = vmatmul.bf16.gmra.mxu0 %v201
    %v358 = vpop.f32.mrf.mxu0
    %v359 = vadd.f32 %v60, %v358
    %v360 = vpop.f32.mrf.mxu0
    %v361 = vadd.f32 %v60, %v360
    %362 = vmatmul.bf16.gmra.mxu0 %v204
    %v363 = vpop.f32.mrf.mxu0
    %v364 = vadd.f32 %v60, %v363
    %v365 = vpop.f32.mrf.mxu0
    %v366 = vadd.f32 %v60, %v365
    %367 = vmatmul.bf16.gmra.mxu0 %v207
    %v368 = vpop.f32.mrf.mxu0
    %v369 = vadd.f32 %v60, %v368
    %v370 = vpop.f32.mrf.mxu0
    %v371 = vadd.f32 %v60, %v370
    %372 = vmatmul.bf16.gmra.mxu0 %v210
    %v373 = vpop.f32.mrf.mxu0
    %v374 = vadd.f32 %v60, %v373
    %v375 = vpop.f32.mrf.mxu0
    %v376 = vadd.f32 %v60, %v375
    %377 = vmatmul.bf16.gmra.mxu0 %v213
    %v378 = vpop.f32.mrf.mxu0
    %v379 = vadd.f32 %v60, %v378
    %v380 = vpop.f32.mrf.mxu0
    %v381 = vadd.f32 %v60, %v380
    %382 = vmatmul.bf16.gmra.mxu0 %v216
    %v383 = vpop.f32.mrf.mxu0
    %v384 = vadd.f32 %v60, %v383
    %v385 = vpop.f32.mrf.mxu0
    %v386 = vadd.f32 %v60, %v385
    %387 = vmatmul.bf16.gmra.mxu0 %v219
    %v388 = vpop.f32.mrf.mxu0
    %v389 = vadd.f32 %v60, %v388
    %v390 = vpop.f32.mrf.mxu0
    %v391 = vadd.f32 %v60, %v390
    %392 = vmatmul.bf16.gmra.mxu0 %v222
    %v393 = vpop.f32.mrf.mxu0
    %v394 = vadd.f32 %v60, %v393
    %v395 = vpop.f32.mrf.mxu0
    %v396 = vadd.f32 %v60, %v395
    %397 = vmatmul.bf16.gmra.mxu0 %v225
    %v398 = vpop.f32.mrf.mxu0
    %v399 = vadd.f32 %v60, %v398
    %v400 = vpop.f32.mrf.mxu0
    %v401 = vadd.f32 %v60, %v400
    %402 = vmatmul.bf16.gmra.mxu0 %v228
    %v403 = vpop.f32.mrf.mxu0
    %v404 = vadd.f32 %v60, %v403
    %v405 = vpop.f32.mrf.mxu0
    %v406 = vadd.f32 %v60, %v405
    %407 = vdwg.mxu0
    %408 = vmatpush.bf16.msra.mxu0 0
    %409 = vmatpush.bf16.msra.mxu0 0
    %410 = vmatpush.bf16.msra.mxu0 0
    %411 = vmatpush.bf16.msra.mxu0 0
    %412 = vmatpush.bf16.msra.mxu0 0
    %413 = vmatpush.bf16.msra.mxu0 0
    %414 = vmatpush.bf16.msra.mxu0 0
    %415 = vmatpush.bf16.msra.mxu0 %v171
    %416 = vmatmul.bf16.gmra.mxu0 %v183
    %v417 = vpop.f32.mrf.mxu0
    %v418 = vadd.f32 %v61, %v417
    %v419 = vpop.f32.mrf.mxu0
    %v420 = vadd.f32 %v61, %v419
    %421 = vmatmul.bf16.gmra.mxu0 %v186
    %v422 = vpop.f32.mrf.mxu0
    %v423 = vadd.f32 %v61, %v422
    %v424 = vpop.f32.mrf.mxu0
    %v425 = vadd.f32 %v61, %v424
    %426 = vmatmul.bf16.gmra.mxu0 %v189
    %v427 = vpop.f32.mrf.mxu0
    %v428 = vadd.f32 %v61, %v427
    %v429 = vpop.f32.mrf.mxu0
    %v430 = vadd.f32 %v61, %v429
    %431 = vmatmul.bf16.gmra.mxu0 %v192
    %v432 = vpop.f32.mrf.mxu0
    %v433 = vadd.f32 %v61, %v432
    %v434 = vpop.f32.mrf.mxu0
    %v435 = vadd.f32 %v61, %v434
    %436 = vmatmul.bf16.gmra.mxu0 %v195
    %v437 = vpop.f32.mrf.mxu0
    %v438 = vadd.f32 %v61, %v437
    %v439 = vpop.f32.mrf.mxu0
    %v440 = vadd.f32 %v61, %v439
    %441 = vmatmul.bf16.gmra.mxu0 %v198
    %v442 = vpop.f32.mrf.mxu0
    %v443 = vadd.f32 %v61, %v442
    %v444 = vpop.f32.mrf.mxu0
    %v445 = vadd.f32 %v61, %v444
    %446 = vmatmul.bf16.gmra.mxu0 %v201
    %v447 = vpop.f32.mrf.mxu0
    %v448 = vadd.f32 %v61, %v447
    %v449 = vpop.f32.mrf.mxu0
    %v450 = vadd.f32 %v61, %v449
    %451 = vmatmul.bf16.gmra.mxu0 %v204
    %v452 = vpop.f32.mrf.mxu0
    %v453 = vadd.f32 %v61, %v452
    %v454 = vpop.f32.mrf.mxu0
    %v455 = vadd.f32 %v61, %v454
    %456 = vmatmul.bf16.gmra.mxu0 %v207
    %v457 = vpop.f32.mrf.mxu0
    %v458 = vadd.f32 %v61, %v457
    %v459 = vpop.f32.mrf.mxu0
    %v460 = vadd.f32 %v61, %v459
    %461 = vmatmul.bf16.gmra.mxu0 %v210
    %v462 = vpop.f32.mrf.mxu0
    %v463 = vadd.f32 %v61, %v462
    %v464 = vpop.f32.mrf.mxu0
    %v465 = vadd.f32 %v61, %v464
    %466 = vmatmul.bf16.gmra.mxu0 %v213
    %v467 = vpop.f32.mrf.mxu0
    %v468 = vadd.f32 %v61, %v467
    %v469 = vpop.f32.mrf.mxu0
    %v470 = vadd.f32 %v61, %v469
    %471 = vmatmul.bf16.gmra.mxu0 %v216
    %v472 = vpop.f32.mrf.mxu0
    %v473 = vadd.f32 %v61, %v472
    %v474 = vpop.f32.mrf.mxu0
    %v475 = vadd.f32 %v61, %v474
    %476 = vmatmul.bf16.gmra.mxu0 %v219
    %v477 = vpop.f32.mrf.mxu0
    %v478 = vadd.f32 %v61, %v477
    %v479 = vpop.f32.mrf.mxu0
    %v480 = vadd.f32 %v61, %v479
    %481 = vmatmul.bf16.gmra.mxu0 %v222
    %v482 = vpop.f32.mrf.mxu0
    %v483 = vadd.f32 %v61, %v482
    %v484 = vpop.f32.mrf.mxu0
    %v485 = vadd.f32 %v61, %v484
    %486 = vmatmul.bf16.gmra.mxu0 %v225
    %v487 = vpop.f32.mrf.mxu0
    %v488 = vadd.f32 %v61, %v487
    %v489 = vpop.f32.mrf.mxu0
    %v490 = vadd.f32 %v61, %v489
    %491 = vmatmul.bf16.gmra.mxu0 %v228
    %v492 = vpop.f32.mrf.mxu0
    %v493 = vadd.f32 %v61, %v492
    %v494 = vpop.f32.mrf.mxu0
    %v495 = vadd.f32 %v61, %v494
    %496 = vdwg.mxu0
    %497 = vmatpush.bf16.msra.mxu0 0
    %498 = vmatpush.bf16.msra.mxu0 0
    %499 = vmatpush.bf16.msra.mxu0 0
    %500 = vmatpush.bf16.msra.mxu0 0
    %501 = vmatpush.bf16.msra.mxu0 0
    %502 = vmatpush.bf16.msra.mxu0 0
    %503 = vmatpush.bf16.msra.mxu0 0
    %504 = vmatpush.bf16.msra.mxu0 %v172
    %505 = vmatmul.bf16.gmra.mxu0 %v183
    %v506 = vpop.f32.mrf.mxu0
    %v507 = vadd.f32 %v62, %v506
    %v508 = vpop.f32.mrf.mxu0
    %v509 = vadd.f32 %v62, %v508
    %510 = vmatmul.bf16.gmra.mxu0 %v186
    %v511 = vpop.f32.mrf.mxu0
    %v512 = vadd.f32 %v62, %v511
    %v513 = vpop.f32.mrf.mxu0
    %v514 = vadd.f32 %v62, %v513
    %515 = vmatmul.bf16.gmra.mxu0 %v189
    %v516 = vpop.f32.mrf.mxu0
    %v517 = vadd.f32 %v62, %v516
    %v518 = vpop.f32.mrf.mxu0
    %v519 = vadd.f32 %v62, %v518
    %520 = vmatmul.bf16.gmra.mxu0 %v192
    %v521 = vpop.f32.mrf.mxu0
    %v522 = vadd.f32 %v62, %v521
    %v523 = vpop.f32.mrf.mxu0
    %v524 = vadd.f32 %v62, %v523
    %525 = vmatmul.bf16.gmra.mxu0 %v195
    %v526 = vpop.f32.mrf.mxu0
    %v527 = vadd.f32 %v62, %v526
    %v528 = vpop.f32.mrf.mxu0
    %v529 = vadd.f32 %v62, %v528
    %530 = vmatmul.bf16.gmra.mxu0 %v198
    %v531 = vpop.f32.mrf.mxu0
    %v532 = vadd.f32 %v62, %v531
    %v533 = vpop.f32.mrf.mxu0
    %v534 = vadd.f32 %v62, %v533
    %535 = vmatmul.bf16.gmra.mxu0 %v201
    %v536 = vpop.f32.mrf.mxu0
    %v537 = vadd.f32 %v62, %v536
    %v538 = vpop.f32.mrf.mxu0
    %v539 = vadd.f32 %v62, %v538
    %540 = vmatmul.bf16.gmra.mxu0 %v204
    %v541 = vpop.f32.mrf.mxu0
    %v542 = vadd.f32 %v62, %v541
    %v543 = vpop.f32.mrf.mxu0
    %v544 = vadd.f32 %v62, %v543
    %545 = vmatmul.bf16.gmra.mxu0 %v207
    %v546 = vpop.f32.mrf.mxu0
    %v547 = vadd.f32 %v62, %v546
    %v548 = vpop.f32.mrf.mxu0
    %v549 = vadd.f32 %v62, %v548
    %550 = vmatmul.bf16.gmra.mxu0 %v210
    %v551 = vpop.f32.mrf.mxu0
    %v552 = vadd.f32 %v62, %v551
    %v553 = vpop.f32.mrf.mxu0
    %v554 = vadd.f32 %v62, %v553
    %555 = vmatmul.bf16.gmra.mxu0 %v213
    %v556 = vpop.f32.mrf.mxu0
    %v557 = vadd.f32 %v62, %v556
    %v558 = vpop.f32.mrf.mxu0
    %v559 = vadd.f32 %v62, %v558
    %560 = vmatmul.bf16.gmra.mxu0 %v216
    %v561 = vpop.f32.mrf.mxu0
    %v562 = vadd.f32 %v62, %v561
    %v563 = vpop.f32.mrf.mxu0
    %v564 = vadd.f32 %v62, %v563
    %565 = vmatmul.bf16.gmra.mxu0 %v219
    %v566 = vpop.f32.mrf.mxu0
    %v567 = vadd.f32 %v62, %v566
    %v568 = vpop.f32.mrf.mxu0
    %v569 = vadd.f32 %v62, %v568
    %570 = vmatmul.bf16.gmra.mxu0 %v222
    %v571 = vpop.f32.mrf.mxu0
    %v572 = vadd.f32 %v62, %v571
    %v573 = vpop.f32.mrf.mxu0
    %v574 = vadd.f32 %v62, %v573
    %575 = vmatmul.bf16.gmra.mxu0 %v225
    %v576 = vpop.f32.mrf.mxu0
    %v577 = vadd.f32 %v62, %v576
    %v578 = vpop.f32.mrf.mxu0
    %v579 = vadd.f32 %v62, %v578
    %580 = vmatmul.bf16.gmra.mxu0 %v228
    %v581 = vpop.f32.mrf.mxu0
    %v582 = vadd.f32 %v62, %v581
    %v583 = vpop.f32.mrf.mxu0
    %v584 = vadd.f32 %v62, %v583
    %585 = vdwg.mxu0
    %586 = vmatpush.bf16.msra.mxu0 0
    %587 = vmatpush.bf16.msra.mxu0 0
    %588 = vmatpush.bf16.msra.mxu0 0
    %589 = vmatpush.bf16.msra.mxu0 0
    %590 = vmatpush.bf16.msra.mxu0 0
    %591 = vmatpush.bf16.msra.mxu0 0
    %592 = vmatpush.bf16.msra.mxu0 0
    %593 = vmatpush.bf16.msra.mxu0 %v173
    %594 = vmatmul.bf16.gmra.mxu0 %v183
    %v595 = vpop.f32.mrf.mxu0
    %v596 = vadd.f32 %v63, %v595
    %v597 = vpop.f32.mrf.mxu0
    %v598 = vadd.f32 %v63, %v597
    %599 = vmatmul.bf16.gmra.mxu0 %v186
    %v600 = vpop.f32.mrf.mxu0
    %v601 = vadd.f32 %v63, %v600
    %v602 = vpop.f32.mrf.mxu0
    %v603 = vadd.f32 %v63, %v602
    %604 = vmatmul.bf16.gmra.mxu0 %v189
    %v605 = vpop.f32.mrf.mxu0
    %v606 = vadd.f32 %v63, %v605
    %v607 = vpop.f32.mrf.mxu0
    %v608 = vadd.f32 %v63, %v607
    %609 = vmatmul.bf16.gmra.mxu0 %v192
    %v610 = vpop.f32.mrf.mxu0
    %v611 = vadd.f32 %v63, %v610
    %v612 = vpop.f32.mrf.mxu0
    %v613 = vadd.f32 %v63, %v612
    %614 = vmatmul.bf16.gmra.mxu0 %v195
    %v615 = vpop.f32.mrf.mxu0
    %v616 = vadd.f32 %v63, %v615
    %v617 = vpop.f32.mrf.mxu0
    %v618 = vadd.f32 %v63, %v617
    %619 = vmatmul.bf16.gmra.mxu0 %v198
    %v620 = vpop.f32.mrf.mxu0
    %v621 = vadd.f32 %v63, %v620
    %v622 = vpop.f32.mrf.mxu0
    %v623 = vadd.f32 %v63, %v622
    %624 = vmatmul.bf16.gmra.mxu0 %v201
    %v625 = vpop.f32.mrf.mxu0
    %v626 = vadd.f32 %v63, %v625
    %v627 = vpop.f32.mrf.mxu0
    %v628 = vadd.f32 %v63, %v627
    %629 = vmatmul.bf16.gmra.mxu0 %v204
    %v630 = vpop.f32.mrf.mxu0
    %v631 = vadd.f32 %v63, %v630
    %v632 = vpop.f32.mrf.mxu0
    %v633 = vadd.f32 %v63, %v632
    %634 = vmatmul.bf16.gmra.mxu0 %v207
    %v635 = vpop.f32.mrf.mxu0
    %v636 = vadd.f32 %v63, %v635
    %v637 = vpop.f32.mrf.mxu0
    %v638 = vadd.f32 %v63, %v637
    %639 = vmatmul.bf16.gmra.mxu0 %v210
    %v640 = vpop.f32.mrf.mxu0
    %v641 = vadd.f32 %v63, %v640
    %v642 = vpop.f32.mrf.mxu0
    %v643 = vadd.f32 %v63, %v642
    %644 = vmatmul.bf16.gmra.mxu0 %v213
    %v645 = vpop.f32.mrf.mxu0
    %v646 = vadd.f32 %v63, %v645
    %v647 = vpop.f32.mrf.mxu0
    %v648 = vadd.f32 %v63, %v647
    %649 = vmatmul.bf16.gmra.mxu0 %v216
    %v650 = vpop.f32.mrf.mxu0
    %v651 = vadd.f32 %v63, %v650
    %v652 = vpop.f32.mrf.mxu0
    %v653 = vadd.f32 %v63, %v652
    %654 = vmatmul.bf16.gmra.mxu0 %v219
    %v655 = vpop.f32.mrf.mxu0
    %v656 = vadd.f32 %v63, %v655
    %v657 = vpop.f32.mrf.mxu0
    %v658 = vadd.f32 %v63, %v657
    %659 = vmatmul.bf16.gmra.mxu0 %v222
    %v660 = vpop.f32.mrf.mxu0
    %v661 = vadd.f32 %v63, %v660
    %v662 = vpop.f32.mrf.mxu0
    %v663 = vadd.f32 %v63, %v662
    %664 = vmatmul.bf16.gmra.mxu0 %v225
    %v665 = vpop.f32.mrf.mxu0
    %v666 = vadd.f32 %v63, %v665
    %v667 = vpop.f32.mrf.mxu0
    %v668 = vadd.f32 %v63, %v667
    %669 = vmatmul.bf16.gmra.mxu0 %v228
    %v670 = vpop.f32.mrf.mxu0
    %v671 = vadd.f32 %v63, %v670
    %v672 = vpop.f32.mrf.mxu0
    %v673 = vadd.f32 %v63, %v672
    %674 = vdwg.mxu0
    %675 = vmatpush.bf16.msra.mxu0 0
    %676 = vmatpush.bf16.msra.mxu0 0
    %677 = vmatpush.bf16.msra.mxu0 0
    %678 = vmatpush.bf16.msra.mxu0 0
    %679 = vmatpush.bf16.msra.mxu0 0
    %680 = vmatpush.bf16.msra.mxu0 0
    %681 = vmatpush.bf16.msra.mxu0 0
    %682 = vmatpush.bf16.msra.mxu0 %v174
    %683 = vmatmul.bf16.gmra.mxu0 %v183
    %v684 = vpop.f32.mrf.mxu0
    %v685 = vadd.f32 %v64, %v684
    %v686 = vpop.f32.mrf.mxu0
    %v687 = vadd.f32 %v64, %v686
    %688 = vmatmul.bf16.gmra.mxu0 %v186
    %v689 = vpop.f32.mrf.mxu0
    %v690 = vadd.f32 %v64, %v689
    %v691 = vpop.f32.mrf.mxu0
    %v692 = vadd.f32 %v64, %v691
    %693 = vmatmul.bf16.gmra.mxu0 %v189
    %v694 = vpop.f32.mrf.mxu0
    %v695 = vadd.f32 %v64, %v694
    %v696 = vpop.f32.mrf.mxu0
    %v697 = vadd.f32 %v64, %v696
    %698 = vmatmul.bf16.gmra.mxu0 %v192
    %v699 = vpop.f32.mrf.mxu0
    %v700 = vadd.f32 %v64, %v699
    %v701 = vpop.f32.mrf.mxu0
    %v702 = vadd.f32 %v64, %v701
    %703 = vmatmul.bf16.gmra.mxu0 %v195
    %v704 = vpop.f32.mrf.mxu0
    %v705 = vadd.f32 %v64, %v704
    %v706 = vpop.f32.mrf.mxu0
    %v707 = vadd.f32 %v64, %v706
    %708 = vmatmul.bf16.gmra.mxu0 %v198
    %v709 = vpop.f32.mrf.mxu0
    %v710 = vadd.f32 %v64, %v709
    %v711 = vpop.f32.mrf.mxu0
    %v712 = vadd.f32 %v64, %v711
    %713 = vmatmul.bf16.gmra.mxu0 %v201
    %v714 = vpop.f32.mrf.mxu0
    %v715 = vadd.f32 %v64, %v714
    %v716 = vpop.f32.mrf.mxu0
    %v717 = vadd.f32 %v64, %v716
    %718 = vmatmul.bf16.gmra.mxu0 %v204
    %v719 = vpop.f32.mrf.mxu0
    %v720 = vadd.f32 %v64, %v719
    %v721 = vpop.f32.mrf.mxu0
    %v722 = vadd.f32 %v64, %v721
    %723 = vmatmul.bf16.gmra.mxu0 %v207
    %v724 = vpop.f32.mrf.mxu0
    %v725 = vadd.f32 %v64, %v724
    %v726 = vpop.f32.mrf.mxu0
    %v727 = vadd.f32 %v64, %v726
    %728 = vmatmul.bf16.gmra.mxu0 %v210
    %v729 = vpop.f32.mrf.mxu0
    %v730 = vadd.f32 %v64, %v729
    %v731 = vpop.f32.mrf.mxu0
    %v732 = vadd.f32 %v64, %v731
    %733 = vmatmul.bf16.gmra.mxu0 %v213
    %v734 = vpop.f32.mrf.mxu0
    %v735 = vadd.f32 %v64, %v734
    %v736 = vpop.f32.mrf.mxu0
    %v737 = vadd.f32 %v64, %v736
    %738 = vmatmul.bf16.gmra.mxu0 %v216
    %v739 = vpop.f32.mrf.mxu0
    %v740 = vadd.f32 %v64, %v739
    %v741 = vpop.f32.mrf.mxu0
    %v742 = vadd.f32 %v64, %v741
    %743 = vmatmul.bf16.gmra.mxu0 %v219
    %v744 = vpop.f32.mrf.mxu0
    %v745 = vadd.f32 %v64, %v744
    %v746 = vpop.f32.mrf.mxu0
    %v747 = vadd.f32 %v64, %v746
    %748 = vmatmul.bf16.gmra.mxu0 %v222
    %v749 = vpop.f32.mrf.mxu0
    %v750 = vadd.f32 %v64, %v749
    %v751 = vpop.f32.mrf.mxu0
    %v752 = vadd.f32 %v64, %v751
    %753 = vmatmul.bf16.gmra.mxu0 %v225
    %v754 = vpop.f32.mrf.mxu0
    %v755 = vadd.f32 %v64, %v754
    %v756 = vpop.f32.mrf.mxu0
    %v757 = vadd.f32 %v64, %v756
    %758 = vmatmul.bf16.gmra.mxu0 %v228
    %v759 = vpop.f32.mrf.mxu0
    %v760 = vadd.f32 %v64, %v759
    %v761 = vpop.f32.mrf.mxu0
    %v762 = vadd.f32 %v64, %v761
    %763 = vdwg.mxu0
    %v764 = vpack.c.bf16 %v329, %v240
    %v765 = vpack.c.bf16 %v418, %v418
    %v766 = vpack.c.bf16 %v331, %v242
    %v767 = vpack.c.bf16 %v420, %v420
    %v768 = vpack.c.bf16 %v334, %v245
    %v769 = vpack.c.bf16 %v423, %v423
    %v770 = vpack.c.bf16 %v336, %v247
    %v771 = vpack.c.bf16 %v425, %v425
    %v772 = vpack.c.bf16 %v339, %v250
    %v773 = vpack.c.bf16 %v428, %v428
    %v774 = vpack.c.bf16 %v341, %v252
    %v775 = vpack.c.bf16 %v430, %v430
    %v776 = vpack.c.bf16 %v344, %v255
    %v777 = vpack.c.bf16 %v433, %v433
    %v778 = vpack.c.bf16 %v346, %v257
    %v779 = vpack.c.bf16 %v435, %v435
    %v780 = vpack.c.bf16 %v349, %v260
    %v781 = vpack.c.bf16 %v438, %v438
    %v782 = vpack.c.bf16 %v351, %v262
    %v783 = vpack.c.bf16 %v440, %v440
    %v784 = vpack.c.bf16 %v354, %v265
    %v785 = vpack.c.bf16 %v443, %v443
    %v786 = vpack.c.bf16 %v356, %v267
    %v787 = vpack.c.bf16 %v445, %v445
    %v788 = vpack.c.bf16 %v359, %v270
    %v789 = vpack.c.bf16 %v448, %v448
    %v790 = vpack.c.bf16 %v361, %v272
    %v791 = vpack.c.bf16 %v450, %v450
    %v792 = vpack.c.bf16 %v364, %v275
    %v793 = vpack.c.bf16 %v453, %v453
    %v794 = vpack.c.bf16 %v366, %v277
    %v795 = vpack.c.bf16 %v455, %v455
    %v796 = vpack.c.bf16 %v369, %v280
    %v797 = vpack.c.bf16 %v458, %v458
    %v798 = vpack.c.bf16 %v371, %v282
    %v799 = vpack.c.bf16 %v460, %v460
    %v800 = vpack.c.bf16 %v374, %v285
    %v801 = vpack.c.bf16 %v463, %v463
    %v802 = vpack.c.bf16 %v376, %v287
    %v803 = vpack.c.bf16 %v465, %v465
    %v804 = vpack.c.bf16 %v379, %v290
    %v805 = vpack.c.bf16 %v468, %v468
    %v806 = vpack.c.bf16 %v381, %v292
    %v807 = vpack.c.bf16 %v470, %v470
    %v808 = vpack.c.bf16 %v384, %v295
    %v809 = vpack.c.bf16 %v473, %v473
    %v810 = vpack.c.bf16 %v386, %v297
    %v811 = vpack.c.bf16 %v475, %v475
    %v812 = vpack.c.bf16 %v389, %v300
    %v813 = vpack.c.bf16 %v478, %v478
    %v814 = vpack.c.bf16 %v391, %v302
    %v815 = vpack.c.bf16 %v480, %v480
    %v816 = vpack.c.bf16 %v394, %v305
    %v817 = vpack.c.bf16 %v483, %v483
    %v818 = vpack.c.bf16 %v396, %v307
    %v819 = vpack.c.bf16 %v485, %v485
    %v820 = vpack.c.bf16 %v399, %v310
    %v821 = vpack.c.bf16 %v488, %v488
    %v822 = vpack.c.bf16 %v401, %v312
    %v823 = vpack.c.bf16 %v490, %v490
    %v824 = vpack.c.bf16 %v404, %v315
    %v825 = vpack.c.bf16 %v493, %v493
    %v826 = vpack.c.bf16 %v406, %v317
    %v827 = vpack.c.bf16 %v495, %v495
    %828 = vst [vmem:[#allocation2] sm:$0xff] %v764
    %829 = vst [vmem:[#allocation2 + $0x8] sm:$0xf] %v765
    %830 = vst [vmem:[#allocation2 + $0xc] sm:$0xff] %v766
    %831 = vst [vmem:[#allocation2 + $0x14] sm:$0xf] %v767
    %832 = vst [vmem:[#allocation2 + $0x18] sm:$0xff] %v768
    %833 = vst [vmem:[#allocation2 + $0x20] sm:$0xf] %v769
    %834 = vst [vmem:[#allocation2 + $0x24] sm:$0xff] %v770
    %835 = vst [vmem:[#allocation2 + $0x2c] sm:$0xf] %v771
    %836 = vst [vmem:[#allocation2 + $0x30] sm:$0xff] %v772
    %837 = vst [vmem:[#allocation2 + $0x38] sm:$0xf] %v773
    %838 = vst [vmem:[#allocation2 + $0x3c] sm:$0xff] %v774
    %839 = vst [vmem:[#allocation2 + $0x44] sm:$0xf] %v775
    %840 = vst [vmem:[#allocation2 + $0x48] sm:$0xff] %v776
    %841 = vst [vmem:[#allocation2 + $0x50] sm:$0xf] %v777
    %842 = vst [vmem:[#allocation2 + $0x54] sm:$0xff] %v778
    %843 = vst [vmem:[#allocation2 + $0x5c] sm:$0xf] %v779
    %844 = vst [vmem:[#allocation2 + $0x60] sm:$0xff] %v780
    %845 = vst [vmem:[#allocation2 + $0x68] sm:$0xf] %v781
    %846 = vst [vmem:[#allocation2 + $0x6c] sm:$0xff] %v782
    %847 = vst [vmem:[#allocation2 + $0x74] sm:$0xf] %v783
    %848 = vst [vmem:[#allocation2 + $0x78] sm:$0xff] %v784
    %849 = vst [vmem:[#allocation2 + $0x80] sm:$0xf] %v785
    %850 = vst [vmem:[#allocation2 + $0x84] sm:$0xff] %v786
    %851 = vst [vmem:[#allocation2 + $0x8c] sm:$0xf] %v787
    %852 = vst [vmem:[#allocation2 + $0x90] sm:$0xff] %v788
    %853 = vst [vmem:[#allocation2 + $0x98] sm:$0xf] %v789
    %854 = vst [vmem:[#allocation2 + $0x9c] sm:$0xff] %v790
    %855 = vst [vmem:[#allocation2 + $0xa4] sm:$0xf] %v791
    %856 = vst [vmem:[#allocation2 + $0xa8] sm:$0xff] %v792
    %857 = vst [vmem:[#allocation2 + $0xb0] sm:$0xf] %v793
    %858 = vst [vmem:[#allocation2 + $0xb4] sm:$0xff] %v794
    %859 = vst [vmem:[#allocation2 + $0xbc] sm:$0xf] %v795
    %860 = vst [vmem:[#allocation2 + $0xc0] sm:$0xff] %v796
    %861 = vst [vmem:[#allocation2 + $0xc8] sm:$0xf] %v797
    %862 = vst [vmem:[#allocation2 + $0xcc] sm:$0xff] %v798
    %863 = vst [vmem:[#allocation2 + $0xd4] sm:$0xf] %v799
    %864 = vst [vmem:[#allocation2 + $0xd8] sm:$0xff] %v800
    %865 = vst [vmem:[#allocation2 + $0xe0] sm:$0xf] %v801
    %866 = vst [vmem:[#allocation2 + $0xe4] sm:$0xff] %v802
    %867 = vst [vmem:[#allocation2 + $0xec] sm:$0xf] %v803
    %868 = vst [vmem:[#allocation2 + $0xf0] sm:$0xff] %v804
    %869 = vst [vmem:[#allocation2 + $0xf8] sm:$0xf] %v805
    %870 = vst [vmem:[#allocation2 + $0xfc] sm:$0xff] %v806
    %871 = vst [vmem:[#allocation2 + $0x104] sm:$0xf] %v807
    %872 = vst [vmem:[#allocation2 + $0x108] sm:$0xff] %v808
    %873 = vst [vmem:[#allocation2 + $0x110] sm:$0xf] %v809
    %874 = vst [vmem:[#allocation2 + $0x114] sm:$0xff] %v810
    %875 = vst [vmem:[#allocation2 + $0x11c] sm:$0xf] %v811
    %876 = vst [vmem:[#allocation2 + $0x120] sm:$0xff] %v812
    %877 = vst [vmem:[#allocation2 + $0x128] sm:$0xf] %v813
    %878 = vst [vmem:[#allocation2 + $0x12c] sm:$0xff] %v814
    %879 = vst [vmem:[#allocation2 + $0x134] sm:$0xf] %v815
    %880 = vst [vmem:[#allocation2 + $0x138] sm:$0xff] %v816
    %881 = vst [vmem:[#allocation2 + $0x140] sm:$0xf] %v817
    %882 = vst [vmem:[#allocation2 + $0x144] sm:$0xff] %v818
    %883 = vst [vmem:[#allocation2 + $0x14c] sm:$0xf] %v819
    %884 = vst [vmem:[#allocation2 + $0x150] sm:$0xff] %v820
    %885 = vst [vmem:[#allocation2 + $0x158] sm:$0xf] %v821
    %886 = vst [vmem:[#allocation2 + $0x15c] sm:$0xff] %v822
    %887 = vst [vmem:[#allocation2 + $0x164] sm:$0xf] %v823
    %888 = vst [vmem:[#allocation2 + $0x168] sm:$0xff] %v824
    %889 = vst [vmem:[#allocation2 + $0x170] sm:$0xf] %v825
    %890 = vst [vmem:[#allocation2 + $0x174] sm:$0xff] %v826
    %891 = vst [vmem:[#allocation2 + $0x17c] sm:$0xf] %v827
    %v892 = vpack.c.bf16 %v596, %v507
    %v893 = vpack.c.bf16 %v685, %v685
    %v894 = vpack.c.bf16 %v598, %v509
    %v895 = vpack.c.bf16 %v687, %v687
    %v896 = vpack.c.bf16 %v601, %v512
    %v897 = vpack.c.bf16 %v690, %v690
    %v898 = vpack.c.bf16 %v603, %v514
    %v899 = vpack.c.bf16 %v692, %v692
    %v900 = vpack.c.bf16 %v606, %v517
    %v901 = vpack.c.bf16 %v695, %v695
    %v902 = vpack.c.bf16 %v608, %v519
    %v903 = vpack.c.bf16 %v697, %v697
    %v904 = vpack.c.bf16 %v611, %v522
    %v905 = vpack.c.bf16 %v700, %v700
    %v906 = vpack.c.bf16 %v613, %v524
    %v907 = vpack.c.bf16 %v702, %v702
    %v908 = vpack.c.bf16 %v616, %v527
    %v909 = vpack.c.bf16 %v705, %v705
    %v910 = vpack.c.bf16 %v618, %v529
    %v911 = vpack.c.bf16 %v707, %v707
    %v912 = vpack.c.bf16 %v621, %v532
    %v913 = vpack.c.bf16 %v710, %v710
    %v914 = vpack.c.bf16 %v623, %v534
    %v915 = vpack.c.bf16 %v712, %v712
    %v916 = vpack.c.bf16 %v626, %v537
    %v917 = vpack.c.bf16 %v715, %v715
    %v918 = vpack.c.bf16 %v628, %v539
    %v919 = vpack.c.bf16 %v717, %v717
    %v920 = vpack.c.bf16 %v631, %v542
    %v921 = vpack.c.bf16 %v720, %v720
    %v922 = vpack.c.bf16 %v633, %v544
    %v923 = vpack.c.bf16 %v722, %v722
    %v924 = vpack.c.bf16 %v636, %v547
    %v925 = vpack.c.bf16 %v725, %v725
    %v926 = vpack.c.bf16 %v638, %v549
    %v927 = vpack.c.bf16 %v727, %v727
    %v928 = vpack.c.bf16 %v641, %v552
    %v929 = vpack.c.bf16 %v730, %v730
    %v930 = vpack.c.bf16 %v643, %v554
    %v931 = vpack.c.bf16 %v732, %v732
    %v932 = vpack.c.bf16 %v646, %v557
    %v933 = vpack.c.bf16 %v735, %v735
    %v934 = vpack.c.bf16 %v648, %v559
    %v935 = vpack.c.bf16 %v737, %v737
    %v936 = vpack.c.bf16 %v651, %v562
    %v937 = vpack.c.bf16 %v740, %v740
    %v938 = vpack.c.bf16 %v653, %v564
    %v939 = vpack.c.bf16 %v742, %v742
    %v940 = vpack.c.bf16 %v656, %v567
    %v941 = vpack.c.bf16 %v745, %v745
    %v942 = vpack.c.bf16 %v658, %v569
    %v943 = vpack.c.bf16 %v747, %v747
    %v944 = vpack.c.bf16 %v661, %v572
    %v945 = vpack.c.bf16 %v750, %v750
    %v946 = vpack.c.bf16 %v663, %v574
    %v947 = vpack.c.bf16 %v752, %v752
    %v948 = vpack.c.bf16 %v666, %v577
    %v949 = vpack.c.bf16 %v755, %v755
    %v950 = vpack.c.bf16 %v668, %v579
    %v951 = vpack.c.bf16 %v757, %v757
    %v952 = vpack.c.bf16 %v671, %v582
    %v953 = vpack.c.bf16 %v760, %v760
    %v954 = vpack.c.bf16 %v673, %v584
    %v955 = vpack.c.bf16 %v762, %v762
    %956 = vst [vmem:[#allocation4] sm:$0xff] %v892
    %957 = vst [vmem:[#allocation4 + $0x8] sm:$0xf] %v893
    %958 = vst [vmem:[#allocation4 + $0xc] sm:$0xff] %v894
    %959 = vst [vmem:[#allocation4 + $0x14] sm:$0xf] %v895
    %960 = vst [vmem:[#allocation4 + $0x18] sm:$0xff] %v896
    %961 = vst [vmem:[#allocation4 + $0x20] sm:$0xf] %v897
    %962 = vst [vmem:[#allocation4 + $0x24] sm:$0xff] %v898
    %963 = vst [vmem:[#allocation4 + $0x2c] sm:$0xf] %v899
    %964 = vst [vmem:[#allocation4 + $0x30] sm:$0xff] %v900
    %965 = vst [vmem:[#allocation4 + $0x38] sm:$0xf] %v901
    %966 = vst [vmem:[#allocation4 + $0x3c] sm:$0xff] %v902
    %967 = vst [vmem:[#allocation4 + $0x44] sm:$0xf] %v903
    %968 = vst [vmem:[#allocation4 + $0x48] sm:$0xff] %v904
    %969 = vst [vmem:[#allocation4 + $0x50] sm:$0xf] %v905
    %970 = vst [vmem:[#allocation4 + $0x54] sm:$0xff] %v906
    %971 = vst [vmem:[#allocation4 + $0x5c] sm:$0xf] %v907
    %972 = vst [vmem:[#allocation4 + $0x60] sm:$0xff] %v908
    %973 = vst [vmem:[#allocation4 + $0x68] sm:$0xf] %v909
    %974 = vst [vmem:[#allocation4 + $0x6c] sm:$0xff] %v910
    %975 = vst [vmem:[#allocation4 + $0x74] sm:$0xf] %v911
    %976 = vst [vmem:[#allocation4 + $0x78] sm:$0xff] %v912
    %977 = vst [vmem:[#allocation4 + $0x80] sm:$0xf] %v913
    %978 = vst [vmem:[#allocation4 + $0x84] sm:$0xff] %v914
    %979 = vst [vmem:[#allocation4 + $0x8c] sm:$0xf] %v915
    %980 = vst [vmem:[#allocation4 + $0x90] sm:$0xff] %v916
    %981 = vst [vmem:[#allocation4 + $0x98] sm:$0xf] %v917
    %982 = vst [vmem:[#allocation4 + $0x9c] sm:$0xff] %v918
    %983 = vst [vmem:[#allocation4 + $0xa4] sm:$0xf] %v919
    %984 = vst [vmem:[#allocation4 + $0xa8] sm:$0xff] %v920
    %985 = vst [vmem:[#allocation4 + $0xb0] sm:$0xf] %v921
    %986 = vst [vmem:[#allocation4 + $0xb4] sm:$0xff] %v922
    %987 = vst [vmem:[#allocation4 + $0xbc] sm:$0xf] %v923
    %988 = vst [vmem:[#allocation4 + $0xc0] sm:$0xff] %v924
    %989 = vst [vmem:[#allocation4 + $0xc8] sm:$0xf] %v925
    %990 = vst [vmem:[#allocation4 + $0xcc] sm:$0xff] %v926
    %991 = vst [vmem:[#allocation4 + $0xd4] sm:$0xf] %v927
    %992 = vst [vmem:[#allocation4 + $0xd8] sm:$0xff] %v928
    %993 = vst [vmem:[#allocation4 + $0xe0] sm:$0xf] %v929
    %994 = vst [vmem:[#allocation4 + $0xe4] sm:$0xff] %v930
    %995 = vst [vmem:[#allocation4 + $0xec] sm:$0xf] %v931
    %996 = vst [vmem:[#allocation4 + $0xf0] sm:$0xff] %v932
    %997 = vst [vmem:[#allocation4 + $0xf8] sm:$0xf] %v933
    %998 = vst [vmem:[#allocation4 + $0xfc] sm:$0xff] %v934
    %999 = vst [vmem:[#allocation4 + $0x104] sm:$0xf] %v935
    %1000 = vst [vmem:[#allocation4 + $0x108] sm:$0xff] %v936
    %1001 = vst [vmem:[#allocation4 + $0x110] sm:$0xf] %v937
    %1002 = vst [vmem:[#allocation4 + $0x114] sm:$0xff] %v938
    %1003 = vst [vmem:[#allocation4 + $0x11c] sm:$0xf] %v939
    %1004 = vst [vmem:[#allocation4 + $0x120] sm:$0xff] %v940
    %1005 = vst [vmem:[#allocation4 + $0x128] sm:$0xf] %v941
    %1006 = vst [vmem:[#allocation4 + $0x12c] sm:$0xff] %v942
    %1007 = vst [vmem:[#allocation4 + $0x134] sm:$0xf] %v943
    %1008 = vst [vmem:[#allocation4 + $0x138] sm:$0xff] %v944
    %1009 = vst [vmem:[#allocation4 + $0x140] sm:$0xf] %v945
    %1010 = vst [vmem:[#allocation4 + $0x144] sm:$0xff] %v946
    %1011 = vst [vmem:[#allocation4 + $0x14c] sm:$0xf] %v947
    %1012 = vst [vmem:[#allocation4 + $0x150] sm:$0xff] %v948
    %1013 = vst [vmem:[#allocation4 + $0x158] sm:$0xf] %v949
    %1014 = vst [vmem:[#allocation4 + $0x15c] sm:$0xff] %v950
    %1015 = vst [vmem:[#allocation4 + $0x164] sm:$0xf] %v951
    %1016 = vst [vmem:[#allocation4 + $0x168] sm:$0xff] %v952
    %1017 = vst [vmem:[#allocation4 + $0x170] sm:$0xf] %v953
    %1018 = vst [vmem:[#allocation4 + $0x174] sm:$0xff] %v954
    %1019 = vst [vmem:[#allocation4 + $0x17c] sm:$0xf] %v955
    // Predicated region
    $region14: #{tpu_custom_call.1} parent=1 // pred_check
      _
    $region15: #{tpu_custom_call.1} parent=1 // pred_check_branch
      %1021 = sbr.rel (0) target = $region17
    $region16: #{tpu_custom_call.1} parent=1 // pred_region
      %1023 = vsyncadd [#allocation3], 0
      %s1024 = sshll.u32 [#allocation2], 4
      %s1025 = int_to_ptr.vmem [resolvable:$true] %s1024
      %s1026 = sshll.u32 %s3, 4
      %s1027 = int_to_ptr.hbm [resolvable:$true] %s1026
      %1032 = dma.vmem_to_hbm [thread:$0]  %s1025, 6144, %s1027, [#allocation3], 192, 192, 12
    $region17: #{tpu_custom_call.1} parent=1 // pred_fallthru
      _
    // Predicated region
    $region18: #{tpu_custom_call.1} parent=1 // pred_check
      _
    $region19: #{tpu_custom_call.1} parent=1 // pred_check_branch
      %1034 = sbr.rel (0) target = $region21
    $region20: #{tpu_custom_call.1} parent=1 // pred_region
      %1036 = vsyncadd [#allocation5], 0
      %s1037 = sshll.u32 [#allocation4], 4
      %s1038 = int_to_ptr.vmem [resolvable:$true] %s1037
      %s1039 = sshll.u32 %s4, 4
      %s1040 = int_to_ptr.hbm [resolvable:$true] %s1039
      %1045 = dma.vmem_to_hbm [thread:$0]  %s1038, 6144, %s1040, [#allocation5], 192, 192, 12
    $region21: #{tpu_custom_call.1} parent=1 // pred_fallthru
      _
    // Predicated region
    $region22: #{tpu_custom_call.1} parent=1 // pred_check
      _
    $region23: #{tpu_custom_call.1} parent=1 // pred_check_branch
      %1047 = sbr.rel (0) target = $region25
    $region24: #{tpu_custom_call.1} parent=1 // pred_region
      %1049 = dma.done [#allocation3], 6144
    $region25: #{tpu_custom_call.1} parent=1 // pred_fallthru
      _
    // Predicated region
    $region26: #{tpu_custom_call.1} parent=1 // pred_check
      _
    $region27: #{tpu_custom_call.1} parent=1 // pred_check_branch
      %1051 = sbr.rel (0) target = $region29
    $region28: #{tpu_custom_call.1} parent=1 // pred_region
      %1053 = dma.done [#allocation5], 6144
    $region29: #{tpu_custom_call.1} parent=1 // pred_fallthru
      _
    %1054 = vsyncpa [#allocation3], 1
    %1055 = vsyncpa [#allocation5], 1

</llo_original>
